<compile_context>
chip_gen: v5e
topology: v5e:2x2
jax: 0.10.0
libtpu: 0.0.40
codegen_flags: <defaults>
</compile_context>

<pallas_src>
import functools

import jax
import jax.numpy as jnp
from jax.experimental import pallas as pl
from jax.experimental.pallas import tpu as pltpu

EPS = 1e-5
_VMEM_LIMIT = 32 * 1024 * 1024      # > v5e's 16 MiB default scoped limit, safe on v7x (64 MiB phys)
_ROW_UNIT, _ROW_CAP = 8, 256
_LANE_UNIT, _LANE_CAP = 128, 4096   # 256x4096 f32 = 4 MiB per block


def _pick_tile(dim, unit, cap):
    """Block size for one dim: either the full extent or a multiple of `unit` <= cap.

    Prefers an exact divisor (no masked edge tile) when a reasonably large one exists;
    otherwise returns a capped multiple of `unit` and relies on a cdiv grid with
    in-kernel lane masking (stats pass) / discarded padded writes (apply pass).
    """
    if dim <= unit:
        return dim
    cap = max(unit, (cap // unit) * unit)
    best_exact = 0
    for k in range(min(cap // unit, dim // unit), 0, -1):
        t = k * unit
        if dim % t == 0:
            best_exact = t
            break
    if best_exact >= cap // 2:
        return best_exact
    # Either the full dim (allowed by the (8,128) rule) or a multiple of `unit`.
    return min(dim, cap)


def _stats_kernel(x_ref, stats_ref, *, l_tile, total_l):
    """Per-row running (mean, M2) across lane tiles; Chan parallel combination.

    stats block is (r_tile, 2): col 0 = mean, col 1 = M2 (sum of squared deviations).
    Per-tile stats use sum / sum-of-squares (single pass of x through vregs);
    cancellation is confined to one <= 4096-element f32 tile (negligible for BN)
    and the cross-tile combination stays centered.
    """
    t = pl.program_id(1)

    @pl.when(t == 0)
    def _():
        stats_ref[...] = jnp.zeros_like(stats_ref)

    x = x_ref[...].astype(jnp.float32)               # f32 accumulation even for bf16 inputs

    if total_l % l_tile != 0:
        # Only the last lane tile is partial; mask out its padded lanes.
        valid = jnp.minimum(jnp.int32(l_tile), jnp.int32(total_l) - t * l_tile)
        lane = jax.lax.broadcasted_iota(jnp.int32, x.shape, 1)
        x = jnp.where(lane < valid, x, 0.0)
        n_b = valid.astype(jnp.float32)
    else:
        n_b = jnp.float32(l_tile)

    s = jnp.sum(x, axis=1, keepdims=True)            # (r_tile, 1)
    ss = jnp.sum(x * x, axis=1, keepdims=True)       # (r_tile, 1)
    tile_mean = s / n_b
    tile_m2 = ss - s * tile_mean                     # = ss - s^2 / n_b

    prev = stats_ref[...]
    prev_mean = prev[:, 0:1]
    prev_m2 = prev[:, 1:2]

    n_a = t.astype(jnp.float32) * jnp.float32(l_tile)   # all earlier lane tiles are full
    w = n_b / (n_a + n_b)
    delta = tile_mean - prev_mean
    new_mean = prev_mean + delta * w
    new_m2 = prev_m2 + tile_m2 + (delta * delta) * (n_a * w)
    stats_ref[...] = jnp.concatenate([new_mean, new_m2], axis=1)


def _apply_kernel(x_ref, ss_ref, o_ref):
    """y = x*scale + shift; SiLU(y) = y * sigmoid(y).

    sigmoid = 1/(1+exp(-y)) built from one EUP exp + one EUP approximate reciprocal
    plus a single VALU Newton step (restores ~f32 accuracy, keeps the single EUP
    bundle slot off the critical path on v7x).
    """
    x = x_ref[...].astype(jnp.float32)
    scale = ss_ref[:, 0:1]
    shift = ss_ref[:, 1:2]
    z = x * scale + shift
    e = jnp.exp(-jnp.maximum(z, -80.0))      # clamp avoids inf -> NaN in the Newton step
    d = 1.0 + e
    r = pl.reciprocal(d, approx=True)        # EUP vrcp
    r = r * (2.0 - d * r)                    # one Newton-Raphson step (VALU)
    o_ref[...] = (z * r).astype(o_ref.dtype)


def bn_act(x_nchw, gamma, beta, *, eps=EPS):
    """Training-mode BatchNorm2d (batch statistics) + SiLU. x: (N, C, H, W)."""
    N, C, H, W = x_nchw.shape
    R = N * C
    L = H * W
    x2d = x_nchw.reshape(R, L)   # free row-major reshape: no transpose, no HBM copy

    r_tile = _pick_tile(R, _ROW_UNIT, _ROW_CAP)
    # Guarantee >= 2 row-group blocks when possible so both v7x TensorCores share
    # pass 1 (its only "parallel" grid axis is axis 0).
    if pl.cdiv(R, r_tile) < 2:
        half = ((R // 2) // _ROW_UNIT) * _ROW_UNIT
        if half >= _ROW_UNIT:
            r_tile = half
    l_tile = _pick_tile(L, _LANE_UNIT, _LANE_CAP)
    grid = (pl.cdiv(R, r_tile), pl.cdiv(L, l_tile))

    # ---- Pass 1: per-(image, channel) row statistics (mean, M2) -------------------
    stats = pl.pallas_call(
        functools.partial(_stats_kernel, l_tile=l_tile, total_l=L),
        out_shape=jax.ShapeDtypeStruct((R, 2), jnp.float32),
        grid_spec=pltpu.PrefetchScalarGridSpec(
            num_scalar_prefetch=0,
            grid=grid,
            in_specs=[pl.BlockSpec((r_tile, l_tile), lambda r, t: (r, t))],
            out_specs=pl.BlockSpec((r_tile, 2), lambda r, t: (r, 0))),
        compiler_params=pltpu.CompilerParams(
            dimension_semantics=("parallel", "arbitrary"),
            vmem_limit_bytes=_VMEM_LIMIT),
    )(x2d)

    # ---- Tiny O(N*C) glue: per-row stats -> per-channel batch stats, fold affine ---
    mean_nc = stats[:, 0].reshape(N, C)
    m2_nc = stats[:, 1].reshape(N, C)
    mean_c = jnp.mean(mean_nc, axis=0)                                        # (C,)
    m2_c = jnp.sum(m2_nc, axis=0) + L * jnp.sum((mean_nc - mean_c[None, :]) ** 2, axis=0)
    var_c = m2_c / (N * L)                                                    # biased (matches BN)
    inv_std = jax.lax.rsqrt(var_c + eps)
    scale_c = gamma.astype(jnp.float32) * inv_std
    shift_c = beta.astype(jnp.float32) - mean_c * scale_c
    ss_rows = jnp.stack(
        [jnp.broadcast_to(scale_c[None, :], (N, C)).reshape(R),
         jnp.broadcast_to(shift_c[None, :], (N, C)).reshape(R)], axis=1)      # (R, 2)

    # ---- Pass 2: normalize + SiLU, fully parallel grid -----------------------------
    out2d = pl.pallas_call(
        _apply_kernel,
        out_shape=jax.ShapeDtypeStruct((R, L), x_nchw.dtype),
        grid_spec=pltpu.PrefetchScalarGridSpec(
            num_scalar_prefetch=0,
            grid=grid,
            in_specs=[pl.BlockSpec((r_tile, l_tile), lambda r, t: (r, t)),
                      pl.BlockSpec((r_tile, 2), lambda r, t: (r, 0))],
            out_specs=pl.BlockSpec((r_tile, l_tile), lambda r, t: (r, t))),
        compiler_params=pltpu.CompilerParams(
            dimension_semantics=("parallel", "parallel"),
            vmem_limit_bytes=_VMEM_LIMIT),
    )(x2d, ss_rows)

    return out2d.reshape(N, C, H, W)


def bn_act_ref(x, gamma, beta):
    # Pure-JAX reference (training-mode BatchNorm2d + SiLU).
    mean = jnp.mean(x, axis=(0, 2, 3), keepdims=True)
    var = jnp.var(x, axis=(0, 2, 3), keepdims=True)
    y = (x - mean) / jnp.sqrt(var + EPS)
    y = y * gamma.reshape(1, -1, 1, 1) + beta.reshape(1, -1, 1, 1)
    return y * jax.nn.sigmoid(y)


if __name__ == "__main__":
    key = jax.random.PRNGKey(0)
    kx, kg, kb = jax.random.split(key, 3)

    N, C, H, W = 2, 4, 16, 16
    x = jax.random.normal(kx, (N, C, H, W), dtype=jnp.float32)
    # Deterministic BN affine params (PyTorch default is ones/zeros; perturb slightly).
    gamma = 1.0 + 0.1 * jax.random.normal(kg, (C,), dtype=jnp.float32)
    beta = 0.1 * jax.random.normal(kb, (C,), dtype=jnp.float32)

    out = jax.block_until_ready(bn_act(x, gamma, beta))
    ref = bn_act_ref(x, gamma, beta)
    assert out.shape == (N, C, H, W)
    assert jnp.allclose(out, ref, atol=2e-5, rtol=1e-4), "mismatch vs reference (divisible path)"

    # Robustness check: spatial size > one lane tile and not a multiple of 128
    # -> exercises the cdiv grid + masked edge tile path of the stats pass.
    x2 = jax.random.normal(kx, (2, 4, 65, 65), dtype=jnp.float32)
    out2 = jax.block_until_ready(bn_act(x2, gamma, beta))
    ref2 = bn_act_ref(x2, gamma, beta)
    assert jnp.allclose(out2, ref2, atol=2e-5, rtol=1e-4), "mismatch vs reference (masked path)"

    print("KERNEL_OK")
</pallas_src>

<mosaic_0001>
module attributes {stable_mosaic.version = 11 : i64} {
  func.func @_stats_kernel(%arg0: i32, %arg1: i32, %arg2: memref<8x256xf32, #tpu.memory_space<vmem>>, %arg3: memref<8x2xf32, #tpu.memory_space<vmem>>) attributes {dimension_semantics = [#tpu.dimension_semantics<parallel>, #tpu.dimension_semantics<arbitrary>], iteration_bounds = array<i64: 1, 1>, scalar_prefetch = 0 : i64, scratch_operands = 0 : i64, tpu.core_type = #tpu.core_type<tc>, window_params = [{transform_indices = @transform_0, window_bounds = array<i64: 8, 256>}, {transform_indices = @transform_1, window_bounds = array<i64: 8, 2>}]} {
    %c0_i32 = arith.constant 0 : i32
    %0 = arith.cmpi eq, %arg1, %c0_i32 : i32
    %1 = arith.extui %0 : i1 to i32
    %c0_i32_0 = arith.constant 0 : i32
    %2 = arith.cmpi ne, %1, %c0_i32_0 : i32
    scf.if %2 {
      %cst_11 = arith.constant 0.000000e+00 : f32
      %32 = vector.broadcast %cst_11 : f32 to vector<8x2xf32>
      %c0_12 = arith.constant 0 : index
      %c0_13 = arith.constant 0 : index
      %33 = vector.load %arg3[%c0_12, %c0_13] : memref<8x2xf32, #tpu.memory_space<vmem>>, vector<8x2xf32>
      tpu.vector_store %arg3[%c0_12, %c0_13], %32 {strides = array<i32>} : memref<8x2xf32, #tpu.memory_space<vmem>>, vector<8x2xf32>,
    } else {
    }
    %c0 = arith.constant 0 : index
    %c0_1 = arith.constant 0 : index
    %3 = vector.load %arg2[%c0, %c0_1] : memref<8x256xf32, #tpu.memory_space<vmem>>, vector<8x256xf32>
    %cst = arith.constant dense<0.000000e+00> : vector<8xf32>
    %4 = vector.multi_reduction <add>, %3, %cst [1] : vector<8x256xf32> to vector<8xf32>
    %5 = vector.shape_cast %4 : vector<8xf32> to vector<8x1xf32>
    %6 = arith.mulf %3, %3 : vector<8x256xf32>
    %cst_2 = arith.constant dense<0.000000e+00> : vector<8xf32>
    %7 = vector.multi_reduction <add>, %6, %cst_2 [1] : vector<8x256xf32> to vector<8xf32>
    %8 = vector.shape_cast %7 : vector<8xf32> to vector<8x1xf32>
    %cst_3 = arith.constant 2.560000e+02 : f32
    %9 = vector.broadcast %cst_3 : f32 to vector<8x1xf32>
    %10 = arith.divf %5, %9 : vector<8x1xf32>
    %11 = arith.mulf %5, %10 : vector<8x1xf32>
    %12 = arith.subf %8, %11 : vector<8x1xf32>
    %c0_4 = arith.constant 0 : index
    %c0_5 = arith.constant 0 : index
    %13 = vector.load %arg3[%c0_4, %c0_5] : memref<8x2xf32, #tpu.memory_space<vmem>>, vector<8x2xf32>
    %14 = vector.extract_strided_slice %13 {offsets = [0, 0], sizes = [8, 1], strides = [1, 1]} : vector<8x2xf32> to vector<8x1xf32>
    %15 = vector.extract_strided_slice %13 {offsets = [0, 1], sizes = [8, 1], strides = [1, 1]} : vector<8x2xf32> to vector<8x1xf32>
    %16 = arith.sitofp %arg1 : i32 to f32
    %cst_6 = arith.constant 2.560000e+02 : f32
    %17 = arith.mulf %16, %cst_6 : f32
    %cst_7 = arith.constant 2.560000e+02 : f32
    %18 = arith.addf %17, %cst_7 : f32
    %cst_8 = arith.constant 2.560000e+02 : f32
    %19 = arith.divf %cst_8, %18 : f32
    %20 = arith.subf %10, %14 : vector<8x1xf32>
    %21 = vector.broadcast %19 : f32 to vector<8x1xf32>
    %22 = arith.mulf %20, %21 : vector<8x1xf32>
    %23 = arith.addf %14, %22 : vector<8x1xf32>
    %24 = arith.addf %15, %12 : vector<8x1xf32>
    %25 = arith.mulf %20, %20 : vector<8x1xf32>
    %26 = arith.mulf %17, %19 : f32
    %27 = vector.broadcast %26 : f32 to vector<8x1xf32>
    %28 = arith.mulf %25, %27 : vector<8x1xf32>
    %29 = arith.addf %24, %28 : vector<8x1xf32>
    %30 = tpu.concatenate %23, %29 in 1 : vector<8x1xf32>, vector<8x1xf32> -> vector<8x2xf32>
    %c0_9 = arith.constant 0 : index
    %c0_10 = arith.constant 0 : index
    %31 = vector.load %arg3[%c0_9, %c0_10] : memref<8x2xf32, #tpu.memory_space<vmem>>, vector<8x2xf32>
    tpu.vector_store %arg3[%c0_9, %c0_10], %30 {strides = array<i32>} : memref<8x2xf32, #tpu.memory_space<vmem>>, vector<8x2xf32>,
    return
  }
  func.func @transform_0(%arg0: i32, %arg1: i32) -> (i32, i32) {
    %c0_i32 = arith.constant 0 : i32
    return %arg0, %arg1 : i32, i32
  }
  func.func @transform_1(%arg0: i32, %arg1: i32) -> (i32, i32) {
    %c0_i32 = arith.constant 0 : i32
    %c0_i32_0 = arith.constant 0 : i32
    return %arg0, %c0_i32 : i32, i32
  }
}

</mosaic_0001>

<llo_original>
// kernel: tpu_custom_call.1
$region0: #{tpu_custom_call.1}
  #allocation0 [shape = 'u32[]', space=smem, size = 0x4, offset = 0x4, fixed_abs, tag = 'smem constant byte address 0x4 - core index']
  #allocation1 [shape = 'u32[72,128]{1,0:T(1,128)}', space=vmem, size = 0x9000, scoped, tag = 'internal scratch']
  %s0 = inlined_call_operand.hbm [shape: f32[8,256], index: 0, kind: input, shape index: {}]
  %s1 = inlined_call_operand.vmem [shape: f32[8,2], index: 1, kind: output, shape index: {}]
  %s2 = sld [smem:[#allocation0]]
  $region22: #{tpu_custom_call.1} parent=0
    _
  %s4 = ssub.s32 1, %s2
  %s5 = scalar_select 0, %s4, %s2
  $region1: #{tpu_custom_call.1} parent=0
    #allocation2 [shape = 'u8[8192]{0}', space=vmem, size = 0x2000, scoped, tag = 'input window, operand 0, single buffered']
    #allocation3 [shape = 's32[1]{0}', space=sflag, size = 0x4, scoped, tag = 'scoped memory for tpu_custom_call.1']
    %6 = vsyncpa [#allocation3], 0
    // Predicated region
    $region2: #{tpu_custom_call.1} parent=1 // pred_check
      _
    $region3: #{tpu_custom_call.1} parent=1 // pred_check_branch
      %8 = sbr.rel (0) target = $region5
    $region4: #{tpu_custom_call.1} parent=1 // pred_region
      %10 = vsyncadd [#allocation3], 0
      %s12 = sshll.u32 %s0, 4
      %s13 = int_to_ptr.hbm [resolvable:$true] %s12
      %s14 = sshll.u32 [#allocation2], 4
      %s15 = int_to_ptr.vmem [resolvable:$true] %s14
      %17 = dma.hbm_to_vmem [thread:$0]  %s13, 256, %s15, [#allocation3]
    $region5: #{tpu_custom_call.1} parent=1 // pred_fallthru
      _
    // Predicated region
    $region6: #{tpu_custom_call.1} parent=1 // pred_check
      _
    $region7: #{tpu_custom_call.1} parent=1 // pred_check_branch
      %19 = sbr.rel (0) target = $region9
    $region8: #{tpu_custom_call.1} parent=1 // pred_region
      %21 = dma.done [#allocation3], 256
    $region9: #{tpu_custom_call.1} parent=1 // pred_fallthru
      _
    %p22 = scmp.eq.s32.totalorder 0, 0
    // Predicated region
    $region10: #{tpu_custom_call.1} parent=1 // pred_check
      %p23 = pneg %p22
    $region11: #{tpu_custom_call.1} parent=1 // pred_check_branch
      %25 = sbr.rel (%p23) target = $region13
    $region12: #{tpu_custom_call.1} parent=1 // pred_region
      %vm26 = vcmask 15360
      %27 = vst.msk [vmem:[%s1] sm:$0xff] %vm26, 0.0
    $region13: #{tpu_custom_call.1} parent=1 // pred_fallthru
      _
    %v28 = vld [vmem:[#allocation2] sm:$0xff]
    %v29 = vld [vmem:[#allocation2 + $0x8] sm:$0xff]
    %v30 = vadd.f32 %v28, %v29
    %31 = vadd.xlane.f32.xlu0 %v30
    %v32 = vpop.xlane.xlu0 %31
    %v33 = vmul.f32 %v28, %v28
    %v34 = vmul.f32 %v29, %v29
    %v35 = vadd.f32 %v33, %v34
    %36 = vadd.xlane.f32.xlu0 %v35
    %v37 = vpop.xlane.xlu0 %36
    %v38 = vrcp.pop 256.0
    %v39 = vmul.f32 256.0, %v38
    %v40 = vsub.f32 1.0, %v39
    %v41 = vmul.f32 %v38, %v40
    %v42 = vadd.f32 %v38, %v41
    %vm43 = vweird.f32 %v38
    %v44 = vsel %vm43, %v38, %v42
    %v45 = vmul.f32 %v32, %v44
    %v46 = vmul.f32 %v32, %v45
    %v47 = vsub.f32 %v37, %v46
    %v48 = vld [vmem:[%s1] sm:$0xff]
    %s49 = scvt.s32.f32 0
    %s50 = smul.f32 %s49, 256.0
    %s51 = sadd.f32 %s50, 256.0
    %v52 = vstv %s51
    %v53 = vrcp.pop %v52
    %v54 = vmul.f32 %v52, %v53
    %v55 = vsub.f32 1.0, %v54
    %v56 = vmul.f32 %v53, %v55
    %v57 = vadd.f32 %v53, %v56
    %vm58 = vweird.f32 %v52
    %vm59 = vweird.f32 %v53
    %vm60 = vmor %vm58, %vm59
    %v61 = vsel %vm60, %v53, %v57
    %v62 = vand.u32 2147483647, %v52
    %vm63 = vcmp.eq.f32.partialorder %v62, 8.507059e+37
    %v64 = vand.u32 %v52, 2147483648
    %v65 = vor.u32 1.1754944e-38, %v64
    %v66 = vsel %vm63, %v65, %v61
    %s67 = vtos %v66
    %s68 = smul.f32 256.0, %s67
    %v69 = vsub.f32 %v45, %v48
    %v70 = vstv %s68
    %v71 = vmul.f32 %v69, %v70
    %v72 = vadd.f32 %v48, %v71
    %v73 = vadd.f32 %v48, %v47
    %v74 = vmul.f32 %v69, %v69
    %s75 = smul.f32 %s50, %s68
    %v76 = vstv %s75
    %v77 = vmul.f32 %v74, %v76
    %79 = vrot.lane.b32.xlu0 %v77, 1
    %v80 = vpop.permute.xlu0 %79
    %v82 = vadd.f32 %v73, %v80
    %vm83 = vcmask 7168
    %v84 = vsel %vm83, %v72, %v82
    %vm85 = vcmask 15360
    %86 = vst.msk [vmem:[%s1] sm:$0xff] %vm85, %v84
    // Predicated region
    $region14: #{tpu_custom_call.1} parent=1 // pred_check
      _
    $region15: #{tpu_custom_call.1} parent=1 // pred_check_branch
      %88 = sbr.rel (0) target = $region17
    $region16: #{tpu_custom_call.1} parent=1 // pred_region
      _
    $region17: #{tpu_custom_call.1} parent=1 // pred_fallthru
      _
    // Predicated region
    $region18: #{tpu_custom_call.1} parent=1 // pred_check
      _
    $region19: #{tpu_custom_call.1} parent=1 // pred_check_branch
      %90 = sbr.rel (0) target = $region21
    $region20: #{tpu_custom_call.1} parent=1 // pred_region
      _
    $region21: #{tpu_custom_call.1} parent=1 // pred_fallthru
      _
    %91 = vsyncpa [#allocation3], 1

</llo_original>
